<compile_context>
chip_gen: v7x
topology: tpu7x:2x2x1
jax: 0.10.0
libtpu: 0.0.40
codegen_flags: <defaults>
</compile_context>

<pallas_src>
import functools

import jax
import jax.numpy as jnp
from jax.experimental import pallas as pl
from jax.experimental.pallas import tpu as pltpu

_EPS = 0.001
_LANE = 128
_SUB = 8                      # sublane tile height
_CHUNK_ROWS = 512             # rows per in-kernel compute chunk (256 KiB f32)
_MAX_BLOCK_ROWS = 8192        # 8192*128*4B = 4 MiB per input per block
_MAX_BLOCK_ROWS_V5E = 4096    # v5e: lower HBM BW + smaller scoped-VMEM default
_SPLIT_MIN_ROWS = 2048        # don't split tiny inputs across TensorCores
_VMEM_LIMIT_BYTES = 32 * 1024 * 1024


def _round_up(a, b):
    return ((a + b - 1) // b) * b


def _chip_config():
    """Returns (num_tensorcores, max_block_rows) for the local TPU generation."""
    try:
        kind = jax.devices()[0].device_kind.lower()
    except Exception:  # defensive: fall back to safe single-core settings
        kind = ""
    # 2 TensorCores per chip: v7x and megacore v4/v5p.  v5e/v6e have one.
    two_tc = ("v7" in kind) or ("v5p" in kind) or \
             ("v4" in kind and "lite" not in kind)
    is_v5e = ("v5e" in kind) or ("v5 lite" in kind) or ("v5lite" in kind)
    max_rows = _MAX_BLOCK_ROWS_V5E if is_v5e else _MAX_BLOCK_ROWS
    return (2 if two_tc else 1), max_rows


def _charbonnier_kernel(x_ref, y_ref, out_ref, *, eps, block_rows, per_core,
                        valid_rows, two_core):
    if two_core:
        c = pl.program_id(0)          # "parallel" axis -> TensorCores
        j = pl.program_id(1)          # "arbitrary" reduction axis
        blk = c * per_core + j
        is_first = j == 0
    else:
        blk = pl.program_id(0)
        is_first = blk == 0

    @pl.when(is_first)
    def _init():
        out_ref[...] = jnp.zeros_like(out_ref)

    eps2 = jnp.float32(eps * eps)
    start_row = blk * block_rows

    chunk = min(_CHUNK_ROWS, block_rows)      # multiple of 8
    n_full = block_rows // chunk
    rem = block_rows - n_full * chunk         # multiple of 8

    def accum(r, nrows, masked):
        # Cast inside the kernel (free VPU work) instead of materializing f32
        # copies of the inputs in HBM.
        xv = x_ref[pl.ds(r, nrows), :].astype(jnp.float32)
        yv = y_ref[pl.ds(r, nrows), :].astype(jnp.float32)
        d = xv - yv
        v = jnp.sqrt(d * d + eps2)
        if masked:
            rid = (start_row + r
                   + jax.lax.broadcasted_iota(jnp.int32, (nrows, _LANE), 0))
            # Keep the mask *after* sqrt: select discards garbage rows of the
            # partially-fetched last block without propagating NaN/Inf.
            v = jnp.where(rid < valid_rows, v, jnp.float32(0.0))
        out_ref[...] += jnp.sum(v.reshape(-1, _SUB, _LANE), axis=0)

    def run(masked):
        if n_full == 1 and rem == 0:
            accum(0, chunk, masked)
        else:
            def body(i, carry):
                accum(pl.multiple_of(i * chunk, chunk), chunk, masked)
                return carry
            jax.lax.fori_loop(0, n_full, body, 0)
            if rem:
                accum(n_full * chunk, rem, masked)

    # Fast path: block fully inside the valid rows (the common case).
    @pl.when(start_row + block_rows <= valid_rows)
    def _full():
        run(False)

    # Slow path: partial last block (or a safety-net dead block).
    @pl.when(start_row + block_rows > valid_rows)
    def _partial():
        run(True)


def _charbonnier_partial_sums(xm, ym, eps, ncores, max_rows):
    """Runs the Pallas kernel over a (rows, 128) slab; returns lane partials."""
    rows = xm.shape[0]                        # multiple of 8

    use_split = (ncores == 2) and (rows >= _SPLIT_MIN_ROWS)

    if use_split:
        nb = max(2, pl.cdiv(rows, max_rows))
        if nb % 2:
            nb += 1                            # even block count -> no dead blocks
        block_rows = min(max_rows, _round_up(pl.cdiv(rows, nb), _SUB))
        nb = pl.cdiv(rows, block_rows)
        per_core = pl.cdiv(nb, 2)
        last_blk = nb - 1
        grid = (2, per_core)
        in_map = lambda c, j: (jnp.minimum(c * per_core + j, last_blk), 0)
        out_map = lambda c, j: (c, 0)
        out_rows = 2 * _SUB
        dims = ("parallel", "arbitrary")
    else:
        block_rows = min(max_rows, rows)       # both multiples of 8
        nb = pl.cdiv(rows, block_rows)
        per_core = nb
        grid = (nb,)
        in_map = lambda j: (j, 0)
        out_map = lambda j: (0, 0)
        out_rows = _SUB
        dims = ("arbitrary",)

    kernel = functools.partial(
        _charbonnier_kernel, eps=eps, block_rows=block_rows,
        per_core=per_core, valid_rows=rows, two_core=use_split)

    # TODO(synk): if a bundle dump ever shows the single EUP (sqrt) as the
    # binding slot on v7x, add pipeline_mode=pl.Buffered(3) to the in_specs.
    return pl.pallas_call(
        kernel,
        out_shape=jax.ShapeDtypeStruct((out_rows, _LANE), jnp.float32),
        grid_spec=pltpu.PrefetchScalarGridSpec(
            num_scalar_prefetch=0,
            grid=grid,
            in_specs=[
                pl.BlockSpec((block_rows, _LANE), in_map),
                pl.BlockSpec((block_rows, _LANE), in_map),
            ],
            out_specs=pl.BlockSpec((_SUB, _LANE), out_map),
        ),
        compiler_params=pltpu.CompilerParams(
            dimension_semantics=dims,
            vmem_limit_bytes=_VMEM_LIMIT_BYTES),
    )(xm, ym)


def charbonnier_loss(x, y, eps=_EPS, *, _force_ncores=None,
                     _force_max_rows=None):
    """Pallas TPU implementation of CharbonnierLoss.forward(x, y)."""
    assert x.shape == y.shape
    total = int(x.size)

    xf = x.reshape(-1)
    yf = y.reshape(-1)

    align = _SUB * _LANE                       # 1024
    main = (total // align) * align            # handled by the kernel
    tail = total - main                        # <1024 leftovers -> plain JAX

    eps2 = jnp.float32(eps * eps)

    ncores, max_rows = _chip_config()
    if _force_ncores is not None:
        ncores = _force_ncores
    if _force_max_rows is not None:
        max_rows = _force_max_rows

    if main:
        rows = main // _LANE                   # multiple of 8
        # No jnp.pad: for (8*128)-aligned sizes the reshape is a free view;
        # only the rare unaligned case pays a bulk slice (cheaper than pad,
        # and no eps correction term needed).
        xb = xf if tail == 0 else xf[:main]
        yb = yf if tail == 0 else yf[:main]
        partials = _charbonnier_partial_sums(
            xb.reshape(rows, _LANE), yb.reshape(rows, _LANE),
            eps, ncores, max_rows)
        total_sum = jnp.sum(partials)
    else:
        total_sum = jnp.float32(0.0)

    if tail:
        dt = xf[main:].astype(jnp.float32) - yf[main:].astype(jnp.float32)
        total_sum = total_sum + jnp.sum(jnp.sqrt(dt * dt + eps2))

    return total_sum / jnp.float32(total)


def _ref_loss(x, y, eps=_EPS):
    d = x.astype(jnp.float32) - y.astype(jnp.float32)
    return jnp.mean(jnp.sqrt(d * d + jnp.float32(eps * eps)))


if __name__ == "__main__":
    key = jax.random.PRNGKey(0)
    kx, ky = jax.random.split(key)

    # Primary demo: NCHW, matching the PyTorch convention.
    x = jax.random.normal(kx, (2, 4, 16, 16), dtype=jnp.float32)
    y = jax.random.normal(ky, (2, 4, 16, 16), dtype=jnp.float32)
    loss = charbonnier_loss(x, y)
    jax.block_until_ready(loss)
    assert jnp.allclose(loss, _ref_loss(x, y), rtol=1e-5, atol=1e-6), loss

    # Extra path coverage (still small):
    # 1) unaligned element count -> ragged-tail path, no pad.
    k1, k2 = jax.random.split(ky)
    xa = jax.random.normal(k1, (3, 3, 37, 53), dtype=jnp.float32)
    ya = jax.random.normal(k2, (3, 3, 37, 53), dtype=jnp.float32)
    la = charbonnier_loss(xa, ya)
    jax.block_until_ready(la)
    assert jnp.allclose(la, _ref_loss(xa, ya), rtol=1e-5, atol=1e-6), la

    # 2) multi-block + 2-core split + partial-block masking (forced small
    #    blocks so the paths run on any generation without a huge tensor).
    xb = jax.random.normal(k1, (4, 4, 129, 128), dtype=jnp.float32)
    yb = jax.random.normal(k2, (4, 4, 129, 128), dtype=jnp.float32)
    lb = charbonnier_loss(xb, yb, _force_ncores=2, _force_max_rows=1024)
    jax.block_until_ready(lb)
    assert jnp.allclose(lb, _ref_loss(xb, yb), rtol=1e-5, atol=1e-6), lb

    print("KERNEL_OK")
</pallas_src>

<mosaic_0001>
module attributes {stable_mosaic.version = 11 : i64} {
  func.func @_charbonnier_kernel(%arg0: i32, %arg1: memref<16x128xf32, #tpu.memory_space<vmem>>, %arg2: memref<16x128xf32, #tpu.memory_space<vmem>>, %arg3: memref<8x128xf32, #tpu.memory_space<vmem>>) attributes {dimension_semantics = [#tpu.dimension_semantics<arbitrary>], iteration_bounds = array<i64: 1>, scalar_prefetch = 0 : i64, scratch_operands = 0 : i64, tpu.core_type = #tpu.core_type<tc>, window_params = [{transform_indices = @transform_0, window_bounds = array<i64: 16, 128>}, {transform_indices = @transform_1, window_bounds = array<i64: 16, 128>}, {pipeline_mode = #tpu.pipeline_mode<synchronous>, transform_indices = @transform_2, window_bounds = array<i64: 8, 128>}]} {
    %c0_i32 = arith.constant 0 : i32
    %0 = arith.cmpi eq, %arg0, %c0_i32 : i32
    %1 = arith.extui %0 : i1 to i32
    %c0_i32_0 = arith.constant 0 : i32
    %2 = arith.cmpi ne, %1, %c0_i32_0 : i32
    scf.if %2 {
      %cst_8 = arith.constant 0.000000e+00 : f32
      %12 = vector.broadcast %cst_8 : f32 to vector<8x128xf32>
      %c0 = arith.constant 0 : index
      %c0_9 = arith.constant 0 : index
      %13 = vector.load %arg3[%c0, %c0_9] : memref<8x128xf32, #tpu.memory_space<vmem>>, vector<8x128xf32>
      tpu.vector_store %arg3[%c0, %c0_9], %12 {strides = array<i32>} : memref<8x128xf32, #tpu.memory_space<vmem>>, vector<8x128xf32>,
    } else {
    }
    %c16_i32 = arith.constant 16 : i32
    %3 = arith.muli %arg0, %c16_i32 : i32
    %c16_i32_1 = arith.constant 16 : i32
    %4 = arith.addi %3, %c16_i32_1 : i32
    %c16_i32_2 = arith.constant 16 : i32
    %5 = arith.cmpi sle, %4, %c16_i32_2 : i32
    %6 = arith.extui %5 : i1 to i32
    %cst = arith.constant 9.99999997E-7 : f32
    %c0_i32_3 = arith.constant 0 : i32
    %7 = arith.cmpi ne, %6, %c0_i32_3 : i32
    scf.if %7 {
      %c0 = arith.constant 0 : index
      %c0_8 = arith.constant 0 : index
      %12 = vector.load %arg1[%c0, %c0_8] : memref<16x128xf32, #tpu.memory_space<vmem>>, vector<16x128xf32>
      %c0_9 = arith.constant 0 : index
      %c0_10 = arith.constant 0 : index
      %13 = vector.load %arg2[%c0_9, %c0_10] : memref<16x128xf32, #tpu.memory_space<vmem>>, vector<16x128xf32>
      %14 = arith.subf %12, %13 : vector<16x128xf32>
      %15 = arith.mulf %14, %14 : vector<16x128xf32>
      %16 = vector.broadcast %cst : f32 to vector<16x128xf32>
      %17 = arith.addf %15, %16 : vector<16x128xf32>
      %18 = math.sqrt %17 : vector<16x128xf32>
      %c0_11 = arith.constant 0 : index
      %c0_12 = arith.constant 0 : index
      %19 = vector.load %arg3[%c0_11, %c0_12] : memref<8x128xf32, #tpu.memory_space<vmem>>, vector<8x128xf32>
      %20 = vector.shape_cast %18 : vector<16x128xf32> to vector<2x8x128xf32>
      %cst_13 = arith.constant dense<0.000000e+00> : vector<8x128xf32>
      %21 = vector.multi_reduction <add>, %20, %cst_13 [0] : vector<2x8x128xf32> to vector<8x128xf32>
      %22 = arith.addf %19, %21 : vector<8x128xf32>
      %c0_14 = arith.constant 0 : index
      %c0_15 = arith.constant 0 : index
      %23 = vector.load %arg3[%c0_14, %c0_15] : memref<8x128xf32, #tpu.memory_space<vmem>>, vector<8x128xf32>
      tpu.vector_store %arg3[%c0_14, %c0_15], %22 {strides = array<i32>} : memref<8x128xf32, #tpu.memory_space<vmem>>, vector<8x128xf32>,
    } else {
    }
    %c16_i32_4 = arith.constant 16 : i32
    %8 = arith.addi %3, %c16_i32_4 : i32
    %c16_i32_5 = arith.constant 16 : i32
    %9 = arith.cmpi sgt, %8, %c16_i32_5 : i32
    %10 = arith.extui %9 : i1 to i32
    %cst_6 = arith.constant 9.99999997E-7 : f32
    %c0_i32_7 = arith.constant 0 : i32
    %11 = arith.cmpi ne, %10, %c0_i32_7 : i32
    scf.if %11 {
      %c0 = arith.constant 0 : index
      %c0_8 = arith.constant 0 : index
      %12 = vector.load %arg1[%c0, %c0_8] : memref<16x128xf32, #tpu.memory_space<vmem>>, vector<16x128xf32>
      %c0_9 = arith.constant 0 : index
      %c0_10 = arith.constant 0 : index
      %13 = vector.load %arg2[%c0_9, %c0_10] : memref<16x128xf32, #tpu.memory_space<vmem>>, vector<16x128xf32>
      %14 = arith.subf %12, %13 : vector<16x128xf32>
      %15 = arith.mulf %14, %14 : vector<16x128xf32>
      %16 = vector.broadcast %cst_6 : f32 to vector<16x128xf32>
      %17 = arith.addf %15, %16 : vector<16x128xf32>
      %18 = math.sqrt %17 : vector<16x128xf32>
      %c0_i32_11 = arith.constant 0 : i32
      %19 = arith.addi %3, %c0_i32_11 : i32
      %20 = tpu.iota {dimensions = array<i32: 0>} : vector<16x128xi32>
      %21 = vector.broadcast %19 : i32 to vector<16x128xi32>
      %22 = arith.addi %21, %20 : vector<16x128xi32>
      %c16_i32_12 = arith.constant 16 : i32
      %23 = vector.broadcast %c16_i32_12 : i32 to vector<16x128xi32>
      %24 = arith.cmpi slt, %22, %23 : vector<16x128xi32>
      %cst_13 = arith.constant 0.000000e+00 : f32
      %25 = vector.broadcast %cst_13 : f32 to vector<16x128xf32>
      %26 = arith.select %24, %18, %25 : vector<16x128xi1>, vector<16x128xf32>
      %c0_14 = arith.constant 0 : index
      %c0_15 = arith.constant 0 : index
      %27 = vector.load %arg3[%c0_14, %c0_15] : memref<8x128xf32, #tpu.memory_space<vmem>>, vector<8x128xf32>
      %28 = vector.shape_cast %26 : vector<16x128xf32> to vector<2x8x128xf32>
      %cst_16 = arith.constant dense<0.000000e+00> : vector<8x128xf32>
      %29 = vector.multi_reduction <add>, %28, %cst_16 [0] : vector<2x8x128xf32> to vector<8x128xf32>
      %30 = arith.addf %27, %29 : vector<8x128xf32>
      %c0_17 = arith.constant 0 : index
      %c0_18 = arith.constant 0 : index
      %31 = vector.load %arg3[%c0_17, %c0_18] : memref<8x128xf32, #tpu.memory_space<vmem>>, vector<8x128xf32>
      tpu.vector_store %arg3[%c0_17, %c0_18], %30 {strides = array<i32>} : memref<8x128xf32, #tpu.memory_space<vmem>>, vector<8x128xf32>,
    } else {
    }
    return
  }
  func.func @transform_0(%arg0: i32) -> (i32, i32) {
    %c0_i32 = arith.constant 0 : i32
    %c0_i32_0 = arith.constant 0 : i32
    return %arg0, %c0_i32 : i32, i32
  }
  func.func @transform_1(%arg0: i32) -> (i32, i32) {
    %c0_i32 = arith.constant 0 : i32
    %c0_i32_0 = arith.constant 0 : i32
    return %arg0, %c0_i32 : i32, i32
  }
  func.func @transform_2(%arg0: i32) -> (i32, i32) {
    %c0_i32 = arith.constant 0 : i32
    %c0_i32_0 = arith.constant 0 : i32
    %c0_i32_1 = arith.constant 0 : i32
    return %c0_i32, %c0_i32_0 : i32, i32
  }
}

</mosaic_0001>

<llo_original>
// kernel: tpu_custom_call.1
$region0: #{tpu_custom_call.1}
  #allocation0 [shape = 'u32[]', space=smem, size = 0x4, offset = 0x4, fixed_abs, tag = 'smem constant byte address 0x4 - core index']
  #allocation1 [shape = 'u32[144,128]{1,0:T(1,128)}', space=vmem, size = 0x12000, scoped, tag = 'internal scratch']
  %s0 = inlined_call_operand.hbm [shape: f32[16,128], index: 0, kind: input, shape index: {}]
  %s1 = inlined_call_operand.hbm [shape: f32[16,128], index: 1, kind: input, shape index: {}]
  %s2 = inlined_call_operand.hbm [shape: f32[8,128], index: 2, kind: output, shape index: {}]
  %s3 = sld [smem:[#allocation0]]
  $region38: #{tpu_custom_call.1} parent=0
    _
  %s5 = ssub.s32 1, %s3
  %s6 = scalar_select 0, %s5, %s3
  $region1: #{tpu_custom_call.1} parent=0
    #allocation2 [shape = 'u8[8192]{0}', space=vmem, size = 0x2000, scoped, tag = 'input window, operand 0, single buffered']
    #allocation3 [shape = 's32[1]{0}', space=sflag, size = 0x4, scoped, tag = 'scoped memory for tpu_custom_call.1']
    #allocation4 [shape = 's32[1]{0}', space=sflag, size = 0x4, scoped, tag = 'scoped memory for tpu_custom_call.1']
    #allocation5 [shape = 'u8[8192]{0}', space=vmem, size = 0x2000, scoped, tag = 'input window, operand 1, single buffered']
    #allocation6 [shape = 's32[1]{0}', space=sflag, size = 0x4, scoped, tag = 'scoped memory for tpu_custom_call.1']
    #allocation7 [shape = 'u8[4096]{0}', space=vmem, size = 0x1000, scoped, tag = 'output window, operand 0, single buffered']
    %7 = vsyncpa [#allocation3], 0
    %8 = vsyncpa [#allocation6], 0
    %9 = vsyncpa [#allocation4], 0
    // Predicated region
    $region2: #{tpu_custom_call.1} parent=1 // pred_check
      _
    $region3: #{tpu_custom_call.1} parent=1 // pred_check_branch
      %11 = sbr.rel (0) target = $region5
    $region4: #{tpu_custom_call.1} parent=1 // pred_region
      %s13 = ssub.s32 256, 256
      %14 = vsyncadd [#allocation3], %s13
      %s15 = sshll.u32 [#allocation2], 4
      %s16 = int_to_ptr.vmem [resolvable:$true] %s15
      %21 = dma.hbm_to_vmem [thread:$0]  %s0, 256, %s16, [#allocation3], 128, 128, 8
    $region5: #{tpu_custom_call.1} parent=1 // pred_fallthru
      _
    // Predicated region
    $region6: #{tpu_custom_call.1} parent=1 // pred_check
      _
    $region7: #{tpu_custom_call.1} parent=1 // pred_check_branch
      %23 = sbr.rel (0) target = $region9
    $region8: #{tpu_custom_call.1} parent=1 // pred_region
      %s25 = ssub.s32 256, 256
      %26 = vsyncadd [#allocation6], %s25
      %s27 = sshll.u32 [#allocation5], 4
      %s28 = int_to_ptr.vmem [resolvable:$true] %s27
      %33 = dma.hbm_to_vmem [thread:$0]  %s1, 256, %s28, [#allocation6], 128, 128, 8
    $region9: #{tpu_custom_call.1} parent=1 // pred_fallthru
      _
    // Predicated region
    $region10: #{tpu_custom_call.1} parent=1 // pred_check
      _
    $region11: #{tpu_custom_call.1} parent=1 // pred_check_branch
      %35 = sbr.rel (0) target = $region13
    $region12: #{tpu_custom_call.1} parent=1 // pred_region
      %36 = dma.done [#allocation3], 256
    $region13: #{tpu_custom_call.1} parent=1 // pred_fallthru
      _
    // Predicated region
    $region14: #{tpu_custom_call.1} parent=1 // pred_check
      _
    $region15: #{tpu_custom_call.1} parent=1 // pred_check_branch
      %38 = sbr.rel (0) target = $region17
    $region16: #{tpu_custom_call.1} parent=1 // pred_region
      %39 = dma.done [#allocation6], 256
    $region17: #{tpu_custom_call.1} parent=1 // pred_fallthru
      _
    %p40 = scmp.eq.s32.totalorder 0, 0
    // Predicated region
    $region18: #{tpu_custom_call.1} parent=1 // pred_check
      %p41 = pneg %p40
    $region19: #{tpu_custom_call.1} parent=1 // pred_check_branch
      %43 = sbr.rel (%p41) target = $region21
    $region20: #{tpu_custom_call.1} parent=1 // pred_region
      %44 = vst [vmem:[#allocation7] sm:$0xff] 0.0
    $region21: #{tpu_custom_call.1} parent=1 // pred_fallthru
      _
    %s45 = smul.u32 0, 16
    %s46 = sadd.s32 %s45, 16
    %p47 = scmp.le.s32.totalorder %s46, 16
    // Predicated region
    $region22: #{tpu_custom_call.1} parent=1 // pred_check
      %p48 = pneg %p47
    $region23: #{tpu_custom_call.1} parent=1 // pred_check_branch
      %50 = sbr.rel (%p48) target = $region25
    $region24: #{tpu_custom_call.1} parent=1 // pred_region
      %v51 = vld [vmem:[#allocation2] sm:$0xff]
      %v52 = vld [vmem:[#allocation2 + $0x8] sm:$0xff]
      %v53 = vld [vmem:[#allocation5] sm:$0xff]
      %v54 = vld [vmem:[#allocation5 + $0x8] sm:$0xff]
      %v55 = vsub.f32 %v51, %v53
      %v56 = vsub.f32 %v52, %v54
      %v57 = vmul.f32 %v55, %v55
      %v58 = vmul.f32 %v56, %v56
      %v59 = vadd.f32 %v57, 1e-06
      %v60 = vadd.f32 %v58, 1e-06
      %v61 = vrsqrt.pop %v59
      %v62 = vmul.f32 %v59, %v61
      %vm63 = vcmp.eq.f32.partialorder %v59, inf
      %v64 = vsel %vm63, %v59, %v62
      %vm65 = vcmp.eq.f32.partialorder %v59, 0.0
      %v66 = vand.u32 %v59, 2147483648
      %v67 = vsel %vm65, %v66, %v64
      %v68 = vrsqrt.pop %v60
      %v69 = vmul.f32 %v60, %v68
      %vm70 = vcmp.eq.f32.partialorder %v60, inf
      %v71 = vsel %vm70, %v60, %v69
      %vm72 = vcmp.eq.f32.partialorder %v60, 0.0
      %v73 = vand.u32 %v60, 2147483648
      %v74 = vsel %vm72, %v73, %v71
      %v75 = vld [vmem:[#allocation7] sm:$0xff]
      %v76 = vadd.f32 %v67, %v74
      %v77 = vadd.f32 %v75, %v76
      %78 = vst [vmem:[#allocation7] sm:$0xff] %v77
    $region25: #{tpu_custom_call.1} parent=1 // pred_fallthru
      _
    %p79 = scmp.gt.s32.totalorder %s46, 16
    // Predicated region
    $region26: #{tpu_custom_call.1} parent=1 // pred_check
      %p80 = pneg %p79
    $region27: #{tpu_custom_call.1} parent=1 // pred_check_branch
      %82 = sbr.rel (%p80) target = $region29
    $region28: #{tpu_custom_call.1} parent=1 // pred_region
      %v83 = vld [vmem:[#allocation2] sm:$0xff]
      %v84 = vld [vmem:[#allocation2 + $0x8] sm:$0xff]
      %v85 = vld [vmem:[#allocation5] sm:$0xff]
      %v86 = vld [vmem:[#allocation5 + $0x8] sm:$0xff]
      %v87 = vsub.f32 %v83, %v85
      %v88 = vsub.f32 %v84, %v86
      %v89 = vmul.f32 %v87, %v87
      %v90 = vmul.f32 %v88, %v88
      %v91 = vadd.f32 %v89, 1e-06
      %v92 = vadd.f32 %v90, 1e-06
      %v93 = vrsqrt.pop %v91
      %v94 = vmul.f32 %v91, %v93
      %vm95 = vcmp.eq.f32.partialorder %v91, inf
      %v96 = vsel %vm95, %v91, %v94
      %vm97 = vcmp.eq.f32.partialorder %v91, 0.0
      %v98 = vand.u32 %v91, 2147483648
      %v99 = vsel %vm97, %v98, %v96
      %v100 = vrsqrt.pop %v92
      %v101 = vmul.f32 %v92, %v100
      %vm102 = vcmp.eq.f32.partialorder %v92, inf
      %v103 = vsel %vm102, %v92, %v101
      %vm104 = vcmp.eq.f32.partialorder %v92, 0.0
      %v105 = vand.u32 %v92, 2147483648
      %v106 = vsel %vm104, %v105, %v103
      %v107 = vlaneseq
      %v108 = vshrl.u32 %v107, 7
      %v109 = vadd.s32 %v108, 8
      %v110 = vstv %s45
      %v111 = vadd.s32 %v110, %v108
      %v112 = vadd.s32 %v110, %v109
      %vm113 = vcmp.lt.s32.totalorder %v111, 16
      %vm114 = vcmp.lt.s32.totalorder %v112, 16
      %v115 = vsel %vm113, %v99, 0.0
      %v116 = vsel %vm114, %v106, 0.0
      %v117 = vld [vmem:[#allocation7] sm:$0xff]
      %v118 = vadd.f32 %v115, %v116
      %v119 = vadd.f32 %v117, %v118
      %120 = vst [vmem:[#allocation7] sm:$0xff] %v119
    $region29: #{tpu_custom_call.1} parent=1 // pred_fallthru
      _
    // Predicated region
    $region30: #{tpu_custom_call.1} parent=1 // pred_check
      _
    $region31: #{tpu_custom_call.1} parent=1 // pred_check_branch
      %122 = sbr.rel (0) target = $region33
    $region32: #{tpu_custom_call.1} parent=1 // pred_region
      %s124 = ssub.s32 128, 128
      %125 = vsyncadd [#allocation4], %s124
      %s127 = sshll.u32 [#allocation7], 4
      %s128 = int_to_ptr.vmem [resolvable:$true] %s127
      %130 = dma.vmem_to_hbm [thread:$0]  %s128, 128, %s2, [#allocation4]
    $region33: #{tpu_custom_call.1} parent=1 // pred_fallthru
      _
    // Predicated region
    $region34: #{tpu_custom_call.1} parent=1 // pred_check
      _
    $region35: #{tpu_custom_call.1} parent=1 // pred_check_branch
      %132 = sbr.rel (0) target = $region37
    $region36: #{tpu_custom_call.1} parent=1 // pred_region
      %133 = dma.done [#allocation4], 128
    $region37: #{tpu_custom_call.1} parent=1 // pred_fallthru
      _
    %134 = vsyncpa [#allocation3], 1
    %135 = vsyncpa [#allocation6], 1
    %136 = vsyncpa [#allocation4], 1

</llo_original>
